<compile_context>
chip_gen: v7x
topology: tpu7x:2x2x1
jax: 0.10.0
libtpu: 0.0.40
codegen_flags: <defaults>
</compile_context>

<pallas_src>
import functools

import jax
import jax.numpy as jnp
from jax.experimental import pallas as pl
from jax.experimental.pallas import tpu as pltpu

LN_EPS = 1e-5


def _round_up(n, m):
    return -(-n // m) * m


def _pick_row_tile(n_rows, n_cols, max_tile=512, budget_bytes=2 << 20):
    """Largest 8-multiple row tile keeping the f32 x-tile under budget_bytes."""
    by_budget = max(8, (budget_bytes // max(1, n_cols * 4)) // 8 * 8)
    t = min(max_tile, _round_up(n_rows, 8), by_budget)
    return max(8, (t // 8) * 8)


# --------------------------------------------------------------------------
# Pallas kernels
# --------------------------------------------------------------------------

def _linear_kernel(*refs, ln, eps):
    """Fused [LayerNorm] + matmul + bias:  o = LN(x) @ W + b."""
    if ln:
        x_ref, w_ref, b_ref, g_ref, bt_ref, o_ref = refs
    else:
        x_ref, w_ref, b_ref, o_ref = refs
    x = x_ref[...].astype(jnp.float32)
    if ln:
        mu = jnp.mean(x, axis=-1, keepdims=True)
        xc = x - mu
        var = jnp.mean(xc * xc, axis=-1, keepdims=True)
        x = xc * jax.lax.rsqrt(var + eps) * g_ref[...] + bt_ref[...]
    y = jnp.dot(x, w_ref[...], preferred_element_type=jnp.float32)
    y = y + b_ref[...]
    o_ref[...] = y.astype(o_ref.dtype)


def _attn_proj_kernel(q_ref, kv_ref, wp_ref, bp_ref, o_ref, *, num_heads, head_dim):
    """All-heads attention + fused output projection for one (batch, q-block).

    q_ref : (TQ, C)      -- scale pre-folded into the q projection
    kv_ref: (Nkv, 2C)    -- columns laid out as [k|v] x [head] x [head_dim]
    out   : (TQ, C)      -- lane-dense; o = softmax(q k^T) v, then @ Wproj + b
    The (TQ, Nkv) score matrices stay in VMEM/vregs (never written to HBM).
    """
    C = num_heads * head_dim
    q = q_ref[...].astype(jnp.float32)
    kv = kv_ref[...].astype(jnp.float32)
    outs = []
    for h in range(num_heads):          # static unroll; lane slices per head
        lo = h * head_dim
        hi = lo + head_dim
        qh = q[:, lo:hi]                # (TQ, D)
        kh = kv[:, lo:hi]               # (Nkv, D)
        vh = kv[:, C + lo:C + hi]       # (Nkv, D)
        s = jax.lax.dot_general(qh, kh, (((1,), (1,)), ((), ())),
                                preferred_element_type=jnp.float32)  # (TQ, Nkv)
        m = jnp.max(s, axis=-1, keepdims=True)
        p = jnp.exp(s - m)
        l = jnp.sum(p, axis=-1, keepdims=True)
        oh = jnp.dot(p, vh, preferred_element_type=jnp.float32)
        oh = oh * pl.reciprocal(l, approx=True)          # EUP, not VALU divide
        outs.append(oh)
    o = jnp.concatenate(outs, axis=-1)                   # (TQ, C) lane-dense
    o = jnp.dot(o, wp_ref[...], preferred_element_type=jnp.float32) + bp_ref[...]
    o_ref[...] = o.astype(o_ref.dtype)


# --------------------------------------------------------------------------
# Wrappers around pallas_call
# --------------------------------------------------------------------------

def linear(x2d, w, b, *, ln_params=None, out_dtype=jnp.float32):
    """Row-tiled fused [LN]+matmul+bias.  x2d: (N, Cin), w: (Cin, Cout)."""
    N, Cin = x2d.shape
    Cout = w.shape[1]
    TN = _pick_row_tile(N, Cin)
    Np = _round_up(N, TN)
    if Np != N:
        x2d = jnp.pad(x2d, ((0, Np - N), (0, 0)))

    has_ln = ln_params is not None
    operands = [x2d, w, b.reshape(1, Cout)]
    in_specs = [
        pl.BlockSpec((TN, Cin), lambda i: (i, 0)),
        pl.BlockSpec((Cin, Cout), lambda i: (0, 0)),
        pl.BlockSpec((1, Cout), lambda i: (0, 0)),
    ]
    if has_ln:
        g, bt = ln_params
        operands += [g.reshape(1, Cin), bt.reshape(1, Cin)]
        in_specs += [pl.BlockSpec((1, Cin), lambda i: (0, 0)),
                     pl.BlockSpec((1, Cin), lambda i: (0, 0))]

    out = pl.pallas_call(
        functools.partial(_linear_kernel, ln=has_ln, eps=LN_EPS),
        out_shape=jax.ShapeDtypeStruct((Np, Cout), out_dtype),
        grid_spec=pltpu.PrefetchScalarGridSpec(
            num_scalar_prefetch=0,
            grid=(Np // TN,),
            in_specs=in_specs,
            out_specs=pl.BlockSpec((TN, Cout), lambda i: (i, 0)),
        ),
        compiler_params=pltpu.CompilerParams(
            dimension_semantics=("parallel",)),
    )(*operands)
    return out[:N]


def attention_proj(q3, kv3, wproj, bproj, *, num_heads, out_dtype=jnp.float32):
    """q3: (B, Nq, C) (already scaled), kv3: (B, Nkv, 2C) -> (B, Nq, C)
    with the output projection fused into the kernel epilogue."""
    B, Nq, C = q3.shape
    Nkv = kv3.shape[1]
    D = C // num_heads
    TQ = min(256, _round_up(Nq, 8))        # <=256 keeps (TQ,Nkv) f32 scores VMEM-friendly on v7x
    Nqp = _round_up(Nq, TQ)
    if Nqp != Nq:
        q3 = jnp.pad(q3, ((0, 0), (0, Nqp - Nq), (0, 0)))

    out = pl.pallas_call(
        functools.partial(_attn_proj_kernel, num_heads=num_heads, head_dim=D),
        out_shape=jax.ShapeDtypeStruct((B, Nqp, C), out_dtype),
        grid_spec=pltpu.PrefetchScalarGridSpec(
            num_scalar_prefetch=0,
            grid=(B, Nqp // TQ),
            in_specs=[
                pl.BlockSpec((None, TQ, C), lambda b, i: (b, i, 0)),
                pl.BlockSpec((None, Nkv, 2 * C), lambda b, i: (b, 0, 0)),
                pl.BlockSpec((C, C), lambda b, i: (0, 0)),
                pl.BlockSpec((1, C), lambda b, i: (0, 0)),
            ],
            out_specs=pl.BlockSpec((None, TQ, C), lambda b, i: (b, i, 0)),
        ),
        compiler_params=pltpu.CompilerParams(
            dimension_semantics=("parallel", "parallel")),
    )(q3, kv3, wproj, bproj.reshape(1, C))
    return out[:, :Nq]


# --------------------------------------------------------------------------
# Parameters (deterministic synthetic init) and forward pass
# --------------------------------------------------------------------------

def init_params(key, dim, num_heads, sr_ratio, qkv_bias=True):
    head_dim = dim // num_heads
    ks = iter(jax.random.split(key, 16))

    def lin(cin, cout, bias):
        w = 0.1 * jax.random.normal(next(ks), (cin, cout), jnp.float32)
        if bias:
            b = 0.05 * jax.random.normal(next(ks), (cout,), jnp.float32)
        else:
            b = jnp.zeros((cout,), jnp.float32)
        return w, b

    p = {}
    p["wq"], p["bq"] = lin(dim, dim, qkv_bias)
    p["wkv"], p["bkv"] = lin(dim, 2 * dim, qkv_bias)
    p["wproj"], p["bproj"] = lin(dim, dim, True)
    if sr_ratio > 1:
        # sr conv weights stored HWIO (sr, sr, Cin, Cout)
        p["w_sr"] = 0.1 * jax.random.normal(
            next(ks), (sr_ratio, sr_ratio, dim, dim), jnp.float32)
        p["b_sr"] = 0.05 * jax.random.normal(next(ks), (dim,), jnp.float32)
        p["ln_g"] = 1.0 + 0.1 * jax.random.normal(next(ks), (dim,), jnp.float32)
        p["ln_b"] = 0.05 * jax.random.normal(next(ks), (dim,), jnp.float32)
    p["scale"] = head_dim ** (-0.5)
    return p


def attention_forward(x, H, W, params, num_heads, sr_ratio):
    """x: (B, N, C) with N == H*W.  Returns (B, N, C)."""
    B, N, C = x.shape
    scale = params["scale"]
    x2d = x.reshape(B * N, C)

    # q projection with the softmax scale folded into the weights/bias.
    q2d = linear(x2d, params["wq"] * scale, params["bq"] * scale)

    if sr_ratio > 1:
        Hs, Ws = H // sr_ratio, W // sr_ratio
        Nkv = Hs * Ws
        # Patchify (kernel == stride): non-overlapping patches -> one big-K
        # matmul (no im2col duplication).
        patches = x.reshape(B, Hs, sr_ratio, Ws, sr_ratio, C)
        patches = jnp.transpose(patches, (0, 1, 3, 2, 4, 5))
        patches = patches.reshape(B * Nkv, sr_ratio * sr_ratio * C)
        w_sr2d = params["w_sr"].reshape(sr_ratio * sr_ratio * C, C)
        xr = linear(patches, w_sr2d, params["b_sr"])
        # LayerNorm fused into the kv matmul kernel.
        kv2d = linear(xr, params["wkv"], params["bkv"],
                      ln_params=(params["ln_g"], params["ln_b"]))
    else:
        Nkv = N
        kv2d = linear(x2d, params["wkv"], params["bkv"])

    # No head split/merge transposes: attention reads (TQ, C) / (Nkv, 2C)
    # slabs directly and slices heads in-kernel; proj is fused in-kernel.
    q3 = q2d.reshape(B, N, C)
    kv3 = kv2d.reshape(B, Nkv, 2 * C)
    out = attention_proj(q3, kv3, params["wproj"], params["bproj"],
                         num_heads=num_heads)
    return out.reshape(B, N, C)


# --------------------------------------------------------------------------
# Pure-JAX reference (for correctness check)
# --------------------------------------------------------------------------

def reference_forward(x, H, W, params, num_heads, sr_ratio):
    hp = jax.lax.Precision.HIGHEST
    B, N, C = x.shape
    D = C // num_heads
    scale = params["scale"]

    def dense(z, w, b):
        return jnp.dot(z, w, precision=hp) + b

    q = dense(x, params["wq"], params["bq"])
    q = jnp.transpose(q.reshape(B, N, num_heads, D), (0, 2, 1, 3))

    if sr_ratio > 1:
        x_nhwc = x.reshape(B, H, W, C)
        y = jax.lax.conv_general_dilated(
            x_nhwc, params["w_sr"], (sr_ratio, sr_ratio), "VALID",
            dimension_numbers=("NHWC", "HWIO", "NHWC"), precision=hp)
        x_ = y.reshape(B, -1, C) + params["b_sr"]
        mu = jnp.mean(x_, axis=-1, keepdims=True)
        var = jnp.mean((x_ - mu) ** 2, axis=-1, keepdims=True)
        x_ = (x_ - mu) * jax.lax.rsqrt(var + LN_EPS)
        x_ = x_ * params["ln_g"] + params["ln_b"]
        kv = dense(x_, params["wkv"], params["bkv"])
    else:
        kv = dense(x, params["wkv"], params["bkv"])

    kv = jnp.transpose(kv.reshape(B, -1, 2, num_heads, D), (2, 0, 3, 1, 4))
    k, v = kv[0], kv[1]
    attn = jnp.einsum("bhnd,bhmd->bhnm", q, k, precision=hp) * scale
    attn = jax.nn.softmax(attn, axis=-1)
    o = jnp.einsum("bhnm,bhmd->bhnd", attn, v, precision=hp)
    o = jnp.transpose(o, (0, 2, 1, 3)).reshape(B, N, C)
    return dense(o, params["wproj"], params["bproj"])


# --------------------------------------------------------------------------

if __name__ == "__main__":
    key = jax.random.PRNGKey(0)
    k_in, k_par = jax.random.split(key)

    B, H, W = 2, 16, 16
    DIM, NUM_HEADS, SR_RATIO = 32, 2, 2
    N = H * W

    x = jax.random.normal(k_in, (B, N, DIM), jnp.float32)
    params = init_params(k_par, DIM, NUM_HEADS, SR_RATIO, qkv_bias=True)

    out = attention_forward(x, H, W, params, NUM_HEADS, SR_RATIO)
    out = jax.block_until_ready(out)

    assert out.shape == (B, N, DIM), out.shape
    ref = reference_forward(x, H, W, params, NUM_HEADS, SR_RATIO)
    max_err = float(jnp.max(jnp.abs(out - ref)))
    assert jnp.allclose(out, ref, rtol=3e-3, atol=3e-3), max_err

    print("KERNEL_OK")
</pallas_src>

<mosaic_0001>
module attributes {stable_mosaic.version = 11 : i64} {
  func.func @_linear_kernel(%arg0: i32, %arg1: memref<512x32xf32, #tpu.memory_space<vmem>>, %arg2: memref<32x32xf32, #tpu.memory_space<vmem>>, %arg3: memref<1x32xf32, #tpu.memory_space<vmem>>, %arg4: memref<512x32xf32, #tpu.memory_space<vmem>>) attributes {dimension_semantics = [#tpu.dimension_semantics<parallel>], iteration_bounds = array<i64: 1>, scalar_prefetch = 0 : i64, scratch_operands = 0 : i64, tpu.core_type = #tpu.core_type<tc>, window_params = [{transform_indices = @transform_0, window_bounds = array<i64: 512, 32>}, {pipeline_mode = #tpu.pipeline_mode<synchronous>, transform_indices = @transform_1, window_bounds = array<i64: 32, 32>}, {pipeline_mode = #tpu.pipeline_mode<synchronous>, transform_indices = @transform_2, window_bounds = array<i64: 1, 32>}, {transform_indices = @transform_3, window_bounds = array<i64: 512, 32>}]} {
    %c0 = arith.constant 0 : index
    %c0_0 = arith.constant 0 : index
    %0 = vector.load %arg1[%c0, %c0_0] : memref<512x32xf32, #tpu.memory_space<vmem>>, vector<512x32xf32>
    %c0_1 = arith.constant 0 : index
    %c0_2 = arith.constant 0 : index
    %1 = vector.load %arg2[%c0_1, %c0_2] : memref<32x32xf32, #tpu.memory_space<vmem>>, vector<32x32xf32>
    %cst = arith.constant dense<0.000000e+00> : vector<512x32xf32>
    %2 = tpu.matmul %0, %1, %cst {dimension_numbers = #tpu.dot_dimension_numbers<[1], [0], [0], [1], [0, 0, 1, 1], [], []>} : vector<512x32xf32>, vector<32x32xf32>, vector<512x32xf32> -> vector<512x32xf32>
    %c0_3 = arith.constant 0 : index
    %c0_4 = arith.constant 0 : index
    %3 = vector.load %arg3[%c0_3, %c0_4] : memref<1x32xf32, #tpu.memory_space<vmem>>, vector<1x32xf32>
    %4 = vector.broadcast %3 : vector<1x32xf32> to vector<512x32xf32>
    %5 = arith.addf %2, %4 : vector<512x32xf32>
    %c0_5 = arith.constant 0 : index
    %c0_6 = arith.constant 0 : index
    %6 = vector.load %arg4[%c0_5, %c0_6] : memref<512x32xf32, #tpu.memory_space<vmem>>, vector<512x32xf32>
    tpu.vector_store %arg4[%c0_5, %c0_6], %5 {strides = array<i32>} : memref<512x32xf32, #tpu.memory_space<vmem>>, vector<512x32xf32>,
    return
  }
  func.func @transform_0(%arg0: i32) -> (i32, i32) {
    %c0_i32 = arith.constant 0 : i32
    %c0_i32_0 = arith.constant 0 : i32
    return %arg0, %c0_i32 : i32, i32
  }
  func.func @transform_1(%arg0: i32) -> (i32, i32) {
    %c0_i32 = arith.constant 0 : i32
    %c0_i32_0 = arith.constant 0 : i32
    %c0_i32_1 = arith.constant 0 : i32
    return %c0_i32, %c0_i32_0 : i32, i32
  }
  func.func @transform_2(%arg0: i32) -> (i32, i32) {
    %c0_i32 = arith.constant 0 : i32
    %c0_i32_0 = arith.constant 0 : i32
    %c0_i32_1 = arith.constant 0 : i32
    return %c0_i32, %c0_i32_0 : i32, i32
  }
  func.func @transform_3(%arg0: i32) -> (i32, i32) {
    %c0_i32 = arith.constant 0 : i32
    %c0_i32_0 = arith.constant 0 : i32
    return %arg0, %c0_i32 : i32, i32
  }
}

</mosaic_0001>

<llo_original>
// kernel: tpu_custom_call.1
$region0: #{tpu_custom_call.1}
  #allocation0 [shape = 'u32[]', space=smem, size = 0x4, offset = 0x4, fixed_abs, tag = 'smem constant byte address 0x4 - core index']
  #allocation1 [shape = 'u32[144,128]{1,0:T(1,128)}', space=vmem, size = 0x12000, scoped, tag = 'internal scratch']
  %s0 = inlined_call_operand.vmem [shape: f32[512,32], index: 0, kind: input, shape index: {}]
  %s1 = inlined_call_operand.vmem [shape: f32[32,32], index: 1, kind: input, shape index: {}]
  %s2 = inlined_call_operand.vmem [shape: f32[1,32], index: 2, kind: input, shape index: {}]
  %s3 = inlined_call_operand.vmem [shape: f32[512,32], index: 3, kind: output, shape index: {}]
  %s4 = sld [smem:[#allocation0]]
  $region22: #{tpu_custom_call.1} parent=0
    _
  %s6 = ssub.s32 1, %s4
  %s7 = scalar_select 0, %s6, %s4
  // Predicated region
  $region2: #{tpu_custom_call.1} parent=0 // pred_check
    _
  $region3: #{tpu_custom_call.1} parent=0 // pred_check_branch
    %9 = sbr.rel (0) target = $region5
  $region4: #{tpu_custom_call.1} parent=0 // pred_region
    _
  $region5: #{tpu_custom_call.1} parent=0 // pred_fallthru
    _
  // Predicated region
  $region6: #{tpu_custom_call.1} parent=0 // pred_check
    _
  $region7: #{tpu_custom_call.1} parent=0 // pred_check_branch
    %11 = sbr.rel (0) target = $region9
  $region8: #{tpu_custom_call.1} parent=0 // pred_region
    _
  $region9: #{tpu_custom_call.1} parent=0 // pred_fallthru
    _
  // Predicated region
  $region10: #{tpu_custom_call.1} parent=0 // pred_check
    _
  $region11: #{tpu_custom_call.1} parent=0 // pred_check_branch
    %13 = sbr.rel (0) target = $region13
  $region12: #{tpu_custom_call.1} parent=0 // pred_region
    _
  $region13: #{tpu_custom_call.1} parent=0 // pred_fallthru
    _
  %v14 = vld [vmem:[%s0] sm:$0xff]
  %v15 = vld [vmem:[%s0 + $0x8] sm:$0xff]
  %v16 = vld [vmem:[%s0 + $0x10] sm:$0xff]
  %v17 = vld [vmem:[%s0 + $0x18] sm:$0xff]
  %v18 = vld [vmem:[%s0 + $0x20] sm:$0xff]
  %v19 = vld [vmem:[%s0 + $0x28] sm:$0xff]
  %v20 = vld [vmem:[%s0 + $0x30] sm:$0xff]
  %v21 = vld [vmem:[%s0 + $0x38] sm:$0xff]
  %v22 = vld [vmem:[%s0 + $0x40] sm:$0xff]
  %v23 = vld [vmem:[%s0 + $0x48] sm:$0xff]
  %v24 = vld [vmem:[%s0 + $0x50] sm:$0xff]
  %v25 = vld [vmem:[%s0 + $0x58] sm:$0xff]
  %v26 = vld [vmem:[%s0 + $0x60] sm:$0xff]
  %v27 = vld [vmem:[%s0 + $0x68] sm:$0xff]
  %v28 = vld [vmem:[%s0 + $0x70] sm:$0xff]
  %v29 = vld [vmem:[%s0 + $0x78] sm:$0xff]
  %v30 = vld [vmem:[%s0 + $0x80] sm:$0xff]
  %v31 = vld [vmem:[%s0 + $0x88] sm:$0xff]
  %v32 = vld [vmem:[%s0 + $0x90] sm:$0xff]
  %v33 = vld [vmem:[%s0 + $0x98] sm:$0xff]
  %v34 = vld [vmem:[%s0 + $0xa0] sm:$0xff]
  %v35 = vld [vmem:[%s0 + $0xa8] sm:$0xff]
  %v36 = vld [vmem:[%s0 + $0xb0] sm:$0xff]
  %v37 = vld [vmem:[%s0 + $0xb8] sm:$0xff]
  %v38 = vld [vmem:[%s0 + $0xc0] sm:$0xff]
  %v39 = vld [vmem:[%s0 + $0xc8] sm:$0xff]
  %v40 = vld [vmem:[%s0 + $0xd0] sm:$0xff]
  %v41 = vld [vmem:[%s0 + $0xd8] sm:$0xff]
  %v42 = vld [vmem:[%s0 + $0xe0] sm:$0xff]
  %v43 = vld [vmem:[%s0 + $0xe8] sm:$0xff]
  %v44 = vld [vmem:[%s0 + $0xf0] sm:$0xff]
  %v45 = vld [vmem:[%s0 + $0xf8] sm:$0xff]
  %v46 = vld [vmem:[%s0 + $0x100] sm:$0xff]
  %v47 = vld [vmem:[%s0 + $0x108] sm:$0xff]
  %v48 = vld [vmem:[%s0 + $0x110] sm:$0xff]
  %v49 = vld [vmem:[%s0 + $0x118] sm:$0xff]
  %v50 = vld [vmem:[%s0 + $0x120] sm:$0xff]
  %v51 = vld [vmem:[%s0 + $0x128] sm:$0xff]
  %v52 = vld [vmem:[%s0 + $0x130] sm:$0xff]
  %v53 = vld [vmem:[%s0 + $0x138] sm:$0xff]
  %v54 = vld [vmem:[%s0 + $0x140] sm:$0xff]
  %v55 = vld [vmem:[%s0 + $0x148] sm:$0xff]
  %v56 = vld [vmem:[%s0 + $0x150] sm:$0xff]
  %v57 = vld [vmem:[%s0 + $0x158] sm:$0xff]
  %v58 = vld [vmem:[%s0 + $0x160] sm:$0xff]
  %v59 = vld [vmem:[%s0 + $0x168] sm:$0xff]
  %v60 = vld [vmem:[%s0 + $0x170] sm:$0xff]
  %v61 = vld [vmem:[%s0 + $0x178] sm:$0xff]
  %v62 = vld [vmem:[%s0 + $0x180] sm:$0xff]
  %v63 = vld [vmem:[%s0 + $0x188] sm:$0xff]
  %v64 = vld [vmem:[%s0 + $0x190] sm:$0xff]
  %v65 = vld [vmem:[%s0 + $0x198] sm:$0xff]
  %v66 = vld [vmem:[%s0 + $0x1a0] sm:$0xff]
  %v67 = vld [vmem:[%s0 + $0x1a8] sm:$0xff]
  %v68 = vld [vmem:[%s0 + $0x1b0] sm:$0xff]
  %v69 = vld [vmem:[%s0 + $0x1b8] sm:$0xff]
  %v70 = vld [vmem:[%s0 + $0x1c0] sm:$0xff]
  %v71 = vld [vmem:[%s0 + $0x1c8] sm:$0xff]
  %v72 = vld [vmem:[%s0 + $0x1d0] sm:$0xff]
  %v73 = vld [vmem:[%s0 + $0x1d8] sm:$0xff]
  %v74 = vld [vmem:[%s0 + $0x1e0] sm:$0xff]
  %v75 = vld [vmem:[%s0 + $0x1e8] sm:$0xff]
  %v76 = vld [vmem:[%s0 + $0x1f0] sm:$0xff]
  %v77 = vld [vmem:[%s0 + $0x1f8] sm:$0xff]
  %v78 = vld [vmem:[%s1] sm:$0xff]
  %v79 = vld [vmem:[%s1 + $0x8] sm:$0xff]
  %v80 = vld [vmem:[%s1 + $0x10] sm:$0xff]
  %v81 = vld [vmem:[%s1 + $0x18] sm:$0xff]
  %v82 = vld [vmem:[%s2] sm:$0x1]
  %v84 = vlaneseq
  %v85 = vshrl.u32 %v84, 7
  %v86 = vsub.s32 0, %v85
  %v87 = vrot.slane %v82, %v86
  %vm89 = vcmask 261120
  %v91 = vsel %vm89, %v14, 0
  %v94 = vsel %vm89, %v15, 0
  %v97 = vsel %vm89, %v16, 0
  %v100 = vsel %vm89, %v17, 0
  %v103 = vsel %vm89, %v18, 0
  %v106 = vsel %vm89, %v19, 0
  %v109 = vsel %vm89, %v20, 0
  %v112 = vsel %vm89, %v21, 0
  %v115 = vsel %vm89, %v22, 0
  %v118 = vsel %vm89, %v23, 0
  %v121 = vsel %vm89, %v24, 0
  %v124 = vsel %vm89, %v25, 0
  %v127 = vsel %vm89, %v26, 0
  %v130 = vsel %vm89, %v27, 0
  %v133 = vsel %vm89, %v28, 0
  %v136 = vsel %vm89, %v29, 0
  %v139 = vsel %vm89, %v30, 0
  %v142 = vsel %vm89, %v31, 0
  %v145 = vsel %vm89, %v32, 0
  %v148 = vsel %vm89, %v33, 0
  %v151 = vsel %vm89, %v34, 0
  %v154 = vsel %vm89, %v35, 0
  %v157 = vsel %vm89, %v36, 0
  %v160 = vsel %vm89, %v37, 0
  %v163 = vsel %vm89, %v38, 0
  %v166 = vsel %vm89, %v39, 0
  %v169 = vsel %vm89, %v40, 0
  %v172 = vsel %vm89, %v41, 0
  %v175 = vsel %vm89, %v42, 0
  %v178 = vsel %vm89, %v43, 0
  %v181 = vsel %vm89, %v44, 0
  %v184 = vsel %vm89, %v45, 0
  %v187 = vsel %vm89, %v46, 0
  %v190 = vsel %vm89, %v47, 0
  %v193 = vsel %vm89, %v48, 0
  %v196 = vsel %vm89, %v49, 0
  %v199 = vsel %vm89, %v50, 0
  %v202 = vsel %vm89, %v51, 0
  %v205 = vsel %vm89, %v52, 0
  %v208 = vsel %vm89, %v53, 0
  %v211 = vsel %vm89, %v54, 0
  %v214 = vsel %vm89, %v55, 0
  %v217 = vsel %vm89, %v56, 0
  %v220 = vsel %vm89, %v57, 0
  %v223 = vsel %vm89, %v58, 0
  %v226 = vsel %vm89, %v59, 0
  %v229 = vsel %vm89, %v60, 0
  %v232 = vsel %vm89, %v61, 0
  %v235 = vsel %vm89, %v62, 0
  %v238 = vsel %vm89, %v63, 0
  %v241 = vsel %vm89, %v64, 0
  %v244 = vsel %vm89, %v65, 0
  %v247 = vsel %vm89, %v66, 0
  %v250 = vsel %vm89, %v67, 0
  %v253 = vsel %vm89, %v68, 0
  %v256 = vsel %vm89, %v69, 0
  %v259 = vsel %vm89, %v70, 0
  %v262 = vsel %vm89, %v71, 0
  %v265 = vsel %vm89, %v72, 0
  %v268 = vsel %vm89, %v73, 0
  %v271 = vsel %vm89, %v74, 0
  %v274 = vsel %vm89, %v75, 0
  %v277 = vsel %vm89, %v76, 0
  %v280 = vsel %vm89, %v77, 0
  %282 = vmatprep.subr.mxu0 0.0
  %283 = vmatpush1.msra.mxu0 %v78
  %284 = vmatprep.subr.mxu0 0.0
  %285 = vmatpush1.msra.mxu0 %v79
  %286 = vmatprep.subr.mxu0 0.0
  %287 = vmatpush1.msra.mxu0 %v80
  %288 = vmatprep.subr.mxu0 0.0
  %289 = vmatpush1.msra.mxu0 %v81
  %290 = vmatprep.subr.mxu0 0.0
  %291 = vmatpush1.msra.mxu0 0.0
  %292 = vmatprep.subr.mxu0 0.0
  %293 = vmatpush1.msra.mxu0 0.0
  %294 = vmatprep.subr.mxu0 0.0
  %295 = vmatpush1.msra.mxu0 0.0
  %296 = vmatprep.subr.mxu0 0.0
  %297 = vmatpush1.msra.mxu0 0.0
  %298 = vmatprep.subr.mxu0 0.0
  %299 = vmatpush1.msra.mxu0 0.0
  %300 = vmatprep.subr.mxu0 0.0
  %301 = vmatpush1.msra.mxu0 0.0
  %302 = vmatprep.subr.mxu0 0.0
  %303 = vmatpush1.msra.mxu0 0.0
  %304 = vmatprep.subr.mxu0 0.0
  %305 = vmatpush1.msra.mxu0 0.0
  %306 = vmatprep.subr.mxu0 0.0
  %307 = vmatpush1.msra.mxu0 0.0
  %308 = vmatprep.subr.mxu0 0.0
  %309 = vmatpush1.msra.mxu0 0.0
  %310 = vmatprep.subr.mxu0 0.0
  %311 = vmatpush1.msra.mxu0 0.0
  %312 = vmatprep.subr.mxu0 0.0
  %313 = vmatpush1.msra.mxu0 0.0
  %314 = vmatprep.subr.mxu0 0.0
  %315 = vmatpush1.msra.mxu0 0.0
  %316 = vmatprep.subr.mxu0 0.0
  %317 = vmatpush1.msra.mxu0 0.0
  %318 = vmatprep.subr.mxu0 0.0
  %319 = vmatpush1.msra.mxu0 0.0
  %320 = vmatprep.subr.mxu0 0.0
  %321 = vmatpush1.msra.mxu0 0.0
  %322 = vmatprep.subr.mxu0 0.0
  %323 = vmatpush1.msra.mxu0 0.0
  %324 = vmatprep.subr.mxu0 0.0
  %325 = vmatpush1.msra.mxu0 0.0
  %326 = vmatprep.subr.mxu0 0.0
  %327 = vmatpush1.msra.mxu0 0.0
  %328 = vmatprep.subr.mxu0 0.0
  %329 = vmatpush1.msra.mxu0 0.0
  %330 = vmatprep.subr.mxu0 0.0
  %331 = vmatpush1.msra.mxu0 0.0
  %332 = vmatprep.subr.mxu0 0.0
  %333 = vmatpush1.msra.mxu0 0.0
  %334 = vmatprep.subr.mxu0 0.0
  %335 = vmatpush1.msra.mxu0 0.0
  %336 = vmatprep.subr.mxu0 0.0
  %337 = vmatpush1.msra.mxu0 0.0
  %338 = vmatprep.subr.mxu0 0.0
  %339 = vmatpush1.msra.mxu0 0.0
  %340 = vmatprep.subr.mxu0 0.0
  %341 = vmatpush1.msra.mxu0 0.0
  %342 = vmatprep.subr.mxu0 0.0
  %343 = vmatpush1.msra.mxu0 0.0
  %344 = vmatprep.subr.mxu0 0.0
  %345 = vmatpush1.msra.mxu0 0.0
  %346 = vmatprep.mubr.f32.mxu0 0.0
  %347 = vmatmul.mubr.f32.gmra.mrb[0].mxu0 %v91
  %v348 = vpop.f32.mrb[0].mxu0
  %v349 = vadd.f32 %v87, %v348
  %v350 = vpop.f32.mrb[0].mxu0
  %351 = vmatprep.mubr.f32.mxu0 0.0
  %352 = vmatmul.mubr.f32.gmra.mrb[0].mxu0 %v94
  %v353 = vpop.f32.mrb[0].mxu0
  %v354 = vadd.f32 %v87, %v353
  %v355 = vpop.f32.mrb[0].mxu0
  %356 = vmatprep.mubr.f32.mxu0 0.0
  %357 = vmatmul.mubr.f32.gmra.mrb[0].mxu0 %v97
  %v358 = vpop.f32.mrb[0].mxu0
  %v359 = vadd.f32 %v87, %v358
  %v360 = vpop.f32.mrb[0].mxu0
  %361 = vmatprep.mubr.f32.mxu0 0.0
  %362 = vmatmul.mubr.f32.gmra.mrb[0].mxu0 %v100
  %v363 = vpop.f32.mrb[0].mxu0
  %v364 = vadd.f32 %v87, %v363
  %v365 = vpop.f32.mrb[0].mxu0
  %366 = vmatprep.mubr.f32.mxu0 0.0
  %367 = vmatmul.mubr.f32.gmra.mrb[0].mxu0 %v103
  %v368 = vpop.f32.mrb[0].mxu0
  %v369 = vadd.f32 %v87, %v368
  %v370 = vpop.f32.mrb[0].mxu0
  %371 = vmatprep.mubr.f32.mxu0 0.0
  %372 = vmatmul.mubr.f32.gmra.mrb[0].mxu0 %v106
  %v373 = vpop.f32.mrb[0].mxu0
  %v374 = vadd.f32 %v87, %v373
  %v375 = vpop.f32.mrb[0].mxu0
  %376 = vmatprep.mubr.f32.mxu0 0.0
  %377 = vmatmul.mubr.f32.gmra.mrb[0].mxu0 %v109
  %v378 = vpop.f32.mrb[0].mxu0
  %v379 = vadd.f32 %v87, %v378
  %v380 = vpop.f32.mrb[0].mxu0
  %381 = vmatprep.mubr.f32.mxu0 0.0
  %382 = vmatmul.mubr.f32.gmra.mrb[0].mxu0 %v112
  %v383 = vpop.f32.mrb[0].mxu0
  %v384 = vadd.f32 %v87, %v383
  %v385 = vpop.f32.mrb[0].mxu0
  %386 = vmatprep.mubr.f32.mxu0 0.0
  %387 = vmatmul.mubr.f32.gmra.mrb[0].mxu0 %v115
  %v388 = vpop.f32.mrb[0].mxu0
  %v389 = vadd.f32 %v87, %v388
  %v390 = vpop.f32.mrb[0].mxu0
  %391 = vmatprep.mubr.f32.mxu0 0.0
  %392 = vmatmul.mubr.f32.gmra.mrb[0].mxu0 %v118
  %v393 = vpop.f32.mrb[0].mxu0
  %v394 = vadd.f32 %v87, %v393
  %v395 = vpop.f32.mrb[0].mxu0
  %396 = vmatprep.mubr.f32.mxu0 0.0
  %397 = vmatmul.mubr.f32.gmra.mrb[0].mxu0 %v121
  %v398 = vpop.f32.mrb[0].mxu0
  %v399 = vadd.f32 %v87, %v398
  %v400 = vpop.f32.mrb[0].mxu0
  %401 = vmatprep.mubr.f32.mxu0 0.0
  %402 = vmatmul.mubr.f32.gmra.mrb[0].mxu0 %v124
  %v403 = vpop.f32.mrb[0].mxu0
  %v404 = vadd.f32 %v87, %v403
  %v405 = vpop.f32.mrb[0].mxu0
  %406 = vmatprep.mubr.f32.mxu0 0.0
  %407 = vmatmul.mubr.f32.gmra.mrb[0].mxu0 %v127
  %v408 = vpop.f32.mrb[0].mxu0
  %v409 = vadd.f32 %v87, %v408
  %v410 = vpop.f32.mrb[0].mxu0
  %411 = vmatprep.mubr.f32.mxu0 0.0
  %412 = vmatmul.mubr.f32.gmra.mrb[0].mxu0 %v130
  %v413 = vpop.f32.mrb[0].mxu0
  %v414 = vadd.f32 %v87, %v413
  %v415 = vpop.f32.mrb[0].mxu0
  %416 = vmatprep.mubr.f32.mxu0 0.0
  %417 = vmatmul.mubr.f32.gmra.mrb[0].mxu0 %v133
  %v418 = vpop.f32.mrb[0].mxu0
  %v419 = vadd.f32 %v87, %v418
  %v420 = vpop.f32.mrb[0].mxu0
  %421 = vmatprep.mubr.f32.mxu0 0.0
  %422 = vmatmul.mubr.f32.gmra.mrb[0].mxu0 %v136
  %v423 = vpop.f32.mrb[0].mxu0
  %v424 = vadd.f32 %v87, %v423
  %v425 = vpop.f32.mrb[0].mxu0
  %426 = vmatprep.mubr.f32.mxu0 0.0
  %427 = vmatmul.mubr.f32.gmra.mrb[0].mxu0 %v139
  %v428 = vpop.f32.mrb[0].mxu0
  %v429 = vadd.f32 %v87, %v428
  %v430 = vpop.f32.mrb[0].mxu0
  %431 = vmatprep.mubr.f32.mxu0 0.0
  %432 = vmatmul.mubr.f32.gmra.mrb[0].mxu0 %v142
  %v433 = vpop.f32.mrb[0].mxu0
  %v434 = vadd.f32 %v87, %v433
  %v435 = vpop.f32.mrb[0].mxu0
  %436 = vmatprep.mubr.f32.mxu0 0.0
  %437 = vmatmul.mubr.f32.gmra.mrb[0].mxu0 %v145
  %v438 = vpop.f32.mrb[0].mxu0
  %v439 = vadd.f32 %v87, %v438
  %v440 = vpop.f32.mrb[0].mxu0
  %441 = vmatprep.mubr.f32.mxu0 0.0
  %442 = vmatmul.mubr.f32.gmra.mrb[0].mxu0 %v148
  %v443 = vpop.f32.mrb[0].mxu0
  %v444 = vadd.f32 %v87, %v443
  %v445 = vpop.f32.mrb[0].mxu0
  %446 = vmatprep.mubr.f32.mxu0 0.0
  %447 = vmatmul.mubr.f32.gmra.mrb[0].mxu0 %v151
  %v448 = vpop.f32.mrb[0].mxu0
  %v449 = vadd.f32 %v87, %v448
  %v450 = vpop.f32.mrb[0].mxu0
  %451 = vmatprep.mubr.f32.mxu0 0.0
  %452 = vmatmul.mubr.f32.gmra.mrb[0].mxu0 %v154
  %v453 = vpop.f32.mrb[0].mxu0
  %v454 = vadd.f32 %v87, %v453
  %v455 = vpop.f32.mrb[0].mxu0
  %456 = vmatprep.mubr.f32.mxu0 0.0
  %457 = vmatmul.mubr.f32.gmra.mrb[0].mxu0 %v157
  %v458 = vpop.f32.mrb[0].mxu0
  %v459 = vadd.f32 %v87, %v458
  %v460 = vpop.f32.mrb[0].mxu0
  %461 = vmatprep.mubr.f32.mxu0 0.0
  %462 = vmatmul.mubr.f32.gmra.mrb[0].mxu0 %v160
  %v463 = vpop.f32.mrb[0].mxu0
  %v464 = vadd.f32 %v87, %v463
  %v465 = vpop.f32.mrb[0].mxu0
  %466 = vmatprep.mubr.f32.mxu0 0.0
  %467 = vmatmul.mubr.f32.gmra.mrb[0].mxu0 %v163
  %v468 = vpop.f32.mrb[0].mxu0
  %v469 = vadd.f32 %v87, %v468
  %v470 = vpop.f32.mrb[0].mxu0
  %471 = vmatprep.mubr.f32.mxu0 0.0
  %472 = vmatmul.mubr.f32.gmra.mrb[0].mxu0 %v166
  %v473 = vpop.f32.mrb[0].mxu0
  %v474 = vadd.f32 %v87, %v473
  %v475 = vpop.f32.mrb[0].mxu0
  %476 = vmatprep.mubr.f32.mxu0 0.0
  %477 = vmatmul.mubr.f32.gmra.mrb[0].mxu0 %v169
  %v478 = vpop.f32.mrb[0].mxu0
  %v479 = vadd.f32 %v87, %v478
  %v480 = vpop.f32.mrb[0].mxu0
  %481 = vmatprep.mubr.f32.mxu0 0.0
  %482 = vmatmul.mubr.f32.gmra.mrb[0].mxu0 %v172
  %v483 = vpop.f32.mrb[0].mxu0
  %v484 = vadd.f32 %v87, %v483
  %v485 = vpop.f32.mrb[0].mxu0
  %486 = vmatprep.mubr.f32.mxu0 0.0
  %487 = vmatmul.mubr.f32.gmra.mrb[0].mxu0 %v175
  %v488 = vpop.f32.mrb[0].mxu0
  %v489 = vadd.f32 %v87, %v488
  %v490 = vpop.f32.mrb[0].mxu0
  %491 = vmatprep.mubr.f32.mxu0 0.0
  %492 = vmatmul.mubr.f32.gmra.mrb[0].mxu0 %v178
  %v493 = vpop.f32.mrb[0].mxu0
  %v494 = vadd.f32 %v87, %v493
  %v495 = vpop.f32.mrb[0].mxu0
  %496 = vmatprep.mubr.f32.mxu0 0.0
  %497 = vmatmul.mubr.f32.gmra.mrb[0].mxu0 %v181
  %v498 = vpop.f32.mrb[0].mxu0
  %v499 = vadd.f32 %v87, %v498
  %v500 = vpop.f32.mrb[0].mxu0
  %501 = vmatprep.mubr.f32.mxu0 0.0
  %502 = vmatmul.mubr.f32.gmra.mrb[0].mxu0 %v184
  %v503 = vpop.f32.mrb[0].mxu0
  %v504 = vadd.f32 %v87, %v503
  %v505 = vpop.f32.mrb[0].mxu0
  %506 = vmatprep.mubr.f32.mxu0 0.0
  %507 = vmatmul.mubr.f32.gmra.mrb[0].mxu0 %v187
  %v508 = vpop.f32.mrb[0].mxu0
  %v509 = vadd.f32 %v87, %v508
  %v510 = vpop.f32.mrb[0].mxu0
  %511 = vmatprep.mubr.f32.mxu0 0.0
  %512 = vmatmul.mubr.f32.gmra.mrb[0].mxu0 %v190
  %v513 = vpop.f32.mrb[0].mxu0
  %v514 = vadd.f32 %v87, %v513
  %v515 = vpop.f32.mrb[0].mxu0
  %516 = vmatprep.mubr.f32.mxu0 0.0
  %517 = vmatmul.mubr.f32.gmra.mrb[0].mxu0 %v193
  %v518 = vpop.f32.mrb[0].mxu0
  %v519 = vadd.f32 %v87, %v518
  %v520 = vpop.f32.mrb[0].mxu0
  %521 = vmatprep.mubr.f32.mxu0 0.0
  %522 = vmatmul.mubr.f32.gmra.mrb[0].mxu0 %v196
  %v523 = vpop.f32.mrb[0].mxu0
  %v524 = vadd.f32 %v87, %v523
  %v525 = vpop.f32.mrb[0].mxu0
  %526 = vmatprep.mubr.f32.mxu0 0.0
  %527 = vmatmul.mubr.f32.gmra.mrb[0].mxu0 %v199
  %v528 = vpop.f32.mrb[0].mxu0
  %v529 = vadd.f32 %v87, %v528
  %v530 = vpop.f32.mrb[0].mxu0
  %531 = vmatprep.mubr.f32.mxu0 0.0
  %532 = vmatmul.mubr.f32.gmra.mrb[0].mxu0 %v202
  %v533 = vpop.f32.mrb[0].mxu0
  %v534 = vadd.f32 %v87, %v533
  %v535 = vpop.f32.mrb[0].mxu0
  %536 = vmatprep.mubr.f32.mxu0 0.0
  %537 = vmatmul.mubr.f32.gmra.mrb[0].mxu0 %v205
  %v538 = vpop.f32.mrb[0].mxu0
  %v539 = vadd.f32 %v87, %v538
  %v540 = vpop.f32.mrb[0].mxu0
  %541 = vmatprep.mubr.f32.mxu0 0.0
  %542 = vmatmul.mubr.f32.gmra.mrb[0].mxu0 %v208
  %v543 = vpop.f32.mrb[0].mxu0
  %v544 = vadd.f32 %v87, %v543
  %v545 = vpop.f32.mrb[0].mxu0
  %546 = vmatprep.mubr.f32.mxu0 0.0
  %547 = vmatmul.mubr.f32.gmra.mrb[0].mxu0 %v211
  %v548 = vpop.f32.mrb[0].mxu0
  %v549 = vadd.f32 %v87, %v548
  %v550 = vpop.f32.mrb[0].mxu0
  %551 = vmatprep.mubr.f32.mxu0 0.0
  %552 = vmatmul.mubr.f32.gmra.mrb[0].mxu0 %v214
  %v553 = vpop.f32.mrb[0].mxu0
  %v554 = vadd.f32 %v87, %v553
  %v555 = vpop.f32.mrb[0].mxu0
  %556 = vmatprep.mubr.f32.mxu0 0.0
  %557 = vmatmul.mubr.f32.gmra.mrb[0].mxu0 %v217
  %v558 = vpop.f32.mrb[0].mxu0
  %v559 = vadd.f32 %v87, %v558
  %v560 = vpop.f32.mrb[0].mxu0
  %561 = vmatprep.mubr.f32.mxu0 0.0
  %562 = vmatmul.mubr.f32.gmra.mrb[0].mxu0 %v220
  %v563 = vpop.f32.mrb[0].mxu0
  %v564 = vadd.f32 %v87, %v563
  %v565 = vpop.f32.mrb[0].mxu0
  %566 = vmatprep.mubr.f32.mxu0 0.0
  %567 = vmatmul.mubr.f32.gmra.mrb[0].mxu0 %v223
  %v568 = vpop.f32.mrb[0].mxu0
  %v569 = vadd.f32 %v87, %v568
  %v570 = vpop.f32.mrb[0].mxu0
  %571 = vmatprep.mubr.f32.mxu0 0.0
  %572 = vmatmul.mubr.f32.gmra.mrb[0].mxu0 %v226
  %v573 = vpop.f32.mrb[0].mxu0
  %v574 = vadd.f32 %v87, %v573
  %v575 = vpop.f32.mrb[0].mxu0
  %576 = vmatprep.mubr.f32.mxu0 0.0
  %577 = vmatmul.mubr.f32.gmra.mrb[0].mxu0 %v229
  %v578 = vpop.f32.mrb[0].mxu0
  %v579 = vadd.f32 %v87, %v578
  %v580 = vpop.f32.mrb[0].mxu0
  %581 = vmatprep.mubr.f32.mxu0 0.0
  %582 = vmatmul.mubr.f32.gmra.mrb[0].mxu0 %v232
  %v583 = vpop.f32.mrb[0].mxu0
  %v584 = vadd.f32 %v87, %v583
  %v585 = vpop.f32.mrb[0].mxu0
  %586 = vmatprep.mubr.f32.mxu0 0.0
  %587 = vmatmul.mubr.f32.gmra.mrb[0].mxu0 %v235
  %v588 = vpop.f32.mrb[0].mxu0
  %v589 = vadd.f32 %v87, %v588
  %v590 = vpop.f32.mrb[0].mxu0
  %591 = vmatprep.mubr.f32.mxu0 0.0
  %592 = vmatmul.mubr.f32.gmra.mrb[0].mxu0 %v238
  %v593 = vpop.f32.mrb[0].mxu0
  %v594 = vadd.f32 %v87, %v593
  %v595 = vpop.f32.mrb[0].mxu0
  %596 = vmatprep.mubr.f32.mxu0 0.0
  %597 = vmatmul.mubr.f32.gmra.mrb[0].mxu0 %v241
  %v598 = vpop.f32.mrb[0].mxu0
  %v599 = vadd.f32 %v87, %v598
  %v600 = vpop.f32.mrb[0].mxu0
  %601 = vmatprep.mubr.f32.mxu0 0.0
  %602 = vmatmul.mubr.f32.gmra.mrb[0].mxu0 %v244
  %v603 = vpop.f32.mrb[0].mxu0
  %v604 = vadd.f32 %v87, %v603
  %v605 = vpop.f32.mrb[0].mxu0
  %606 = vmatprep.mubr.f32.mxu0 0.0
  %607 = vmatmul.mubr.f32.gmra.mrb[0].mxu0 %v247
  %v608 = vpop.f32.mrb[0].mxu0
  %v609 = vadd.f32 %v87, %v608
  %v610 = vpop.f32.mrb[0].mxu0
  %611 = vmatprep.mubr.f32.mxu0 0.0
  %612 = vmatmul.mubr.f32.gmra.mrb[0].mxu0 %v250
  %v613 = vpop.f32.mrb[0].mxu0
  %v614 = vadd.f32 %v87, %v613
  %v615 = vpop.f32.mrb[0].mxu0
  %616 = vmatprep.mubr.f32.mxu0 0.0
  %617 = vmatmul.mubr.f32.gmra.mrb[0].mxu0 %v253
  %v618 = vpop.f32.mrb[0].mxu0
  %v619 = vadd.f32 %v87, %v618
  %v620 = vpop.f32.mrb[0].mxu0
  %621 = vmatprep.mubr.f32.mxu0 0.0
  %622 = vmatmul.mubr.f32.gmra.mrb[0].mxu0 %v256
  %v623 = vpop.f32.mrb[0].mxu0
  %v624 = vadd.f32 %v87, %v623
  %v625 = vpop.f32.mrb[0].mxu0
  %626 = vmatprep.mubr.f32.mxu0 0.0
  %627 = vmatmul.mubr.f32.gmra.mrb[0].mxu0 %v259
  %v628 = vpop.f32.mrb[0].mxu0
  %v629 = vadd.f32 %v87, %v628
  %v630 = vpop.f32.mrb[0].mxu0
  %631 = vmatprep.mubr.f32.mxu0 0.0
  %632 = vmatmul.mubr.f32.gmra.mrb[0].mxu0 %v262
  %v633 = vpop.f32.mrb[0].mxu0
  %v634 = vadd.f32 %v87, %v633
  %v635 = vpop.f32.mrb[0].mxu0
  %636 = vmatprep.mubr.f32.mxu0 0.0
  %637 = vmatmul.mubr.f32.gmra.mrb[0].mxu0 %v265
  %v638 = vpop.f32.mrb[0].mxu0
  %v639 = vadd.f32 %v87, %v638
  %v640 = vpop.f32.mrb[0].mxu0
  %641 = vmatprep.mubr.f32.mxu0 0.0
  %642 = vmatmul.mubr.f32.gmra.mrb[0].mxu0 %v268
  %v643 = vpop.f32.mrb[0].mxu0
  %v644 = vadd.f32 %v87, %v643
  %v645 = vpop.f32.mrb[0].mxu0
  %646 = vmatprep.mubr.f32.mxu0 0.0
  %647 = vmatmul.mubr.f32.gmra.mrb[0].mxu0 %v271
  %v648 = vpop.f32.mrb[0].mxu0
  %v649 = vadd.f32 %v87, %v648
  %v650 = vpop.f32.mrb[0].mxu0
  %651 = vmatprep.mubr.f32.mxu0 0.0
  %652 = vmatmul.mubr.f32.gmra.mrb[0].mxu0 %v274
  %v653 = vpop.f32.mrb[0].mxu0
  %v654 = vadd.f32 %v87, %v653
  %v655 = vpop.f32.mrb[0].mxu0
  %656 = vmatprep.mubr.f32.mxu0 0.0
  %657 = vmatmul.mubr.f32.gmra.mrb[0].mxu0 %v277
  %v658 = vpop.f32.mrb[0].mxu0
  %v659 = vadd.f32 %v87, %v658
  %v660 = vpop.f32.mrb[0].mxu0
  %661 = vmatprep.mubr.f32.mxu0 0.0
  %662 = vmatmul.mubr.f32.gmra.mrb[0].mxu0 %v280
  %v663 = vpop.f32.mrb[0].mxu0
  %v664 = vadd.f32 %v87, %v663
  %v665 = vpop.f32.mrb[0].mxu0
  %666 = vdwg.mxu0
  %667 = vst.msk [vmem:[%s3] sm:$0xff] %vm89, %v349
  %668 = vst.msk [vmem:[%s3 + $0x8] sm:$0xff] %vm89, %v354
  %669 = vst.msk [vmem:[%s3 + $0x10] sm:$0xff] %vm89, %v359
  %670 = vst.msk [vmem:[%s3 + $0x18] sm:$0xff] %vm89, %v364
  %671 = vst.msk [vmem:[%s3 + $0x20] sm:$0xff] %vm89, %v369
  %672 = vst.msk [vmem:[%s3 + $0x28] sm:$0xff] %vm89, %v374
  %673 = vst.msk [vmem:[%s3 + $0x30] sm:$0xff] %vm89, %v379
  %674 = vst.msk [vmem:[%s3 + $0x38] sm:$0xff] %vm89, %v384
  %675 = vst.msk [vmem:[%s3 + $0x40] sm:$0xff] %vm89, %v389
  %676 = vst.msk [vmem:[%s3 + $0x48] sm:$0xff] %vm89, %v394
  %677 = vst.msk [vmem:[%s3 + $0x50] sm:$0xff] %vm89, %v399
  %678 = vst.msk [vmem:[%s3 + $0x58] sm:$0xff] %vm89, %v404
  %679 = vst.msk [vmem:[%s3 + $0x60] sm:$0xff] %vm89, %v409
  %680 = vst.msk [vmem:[%s3 + $0x68] sm:$0xff] %vm89, %v414
  %681 = vst.msk [vmem:[%s3 + $0x70] sm:$0xff] %vm89, %v419
  %682 = vst.msk [vmem:[%s3 + $0x78] sm:$0xff] %vm89, %v424
  %683 = vst.msk [vmem:[%s3 + $0x80] sm:$0xff] %vm89, %v429
  %684 = vst.msk [vmem:[%s3 + $0x88] sm:$0xff] %vm89, %v434
  %685 = vst.msk [vmem:[%s3 + $0x90] sm:$0xff] %vm89, %v439
  %686 = vst.msk [vmem:[%s3 + $0x98] sm:$0xff] %vm89, %v444
  %687 = vst.msk [vmem:[%s3 + $0xa0] sm:$0xff] %vm89, %v449
  %688 = vst.msk [vmem:[%s3 + $0xa8] sm:$0xff] %vm89, %v454
  %689 = vst.msk [vmem:[%s3 + $0xb0] sm:$0xff] %vm89, %v459
  %690 = vst.msk [vmem:[%s3 + $0xb8] sm:$0xff] %vm89, %v464
  %691 = vst.msk [vmem:[%s3 + $0xc0] sm:$0xff] %vm89, %v469
  %692 = vst.msk [vmem:[%s3 + $0xc8] sm:$0xff] %vm89, %v474
  %693 = vst.msk [vmem:[%s3 + $0xd0] sm:$0xff] %vm89, %v479
  %694 = vst.msk [vmem:[%s3 + $0xd8] sm:$0xff] %vm89, %v484
  %695 = vst.msk [vmem:[%s3 + $0xe0] sm:$0xff] %vm89, %v489
  %696 = vst.msk [vmem:[%s3 + $0xe8] sm:$0xff] %vm89, %v494
  %697 = vst.msk [vmem:[%s3 + $0xf0] sm:$0xff] %vm89, %v499
  %698 = vst.msk [vmem:[%s3 + $0xf8] sm:$0xff] %vm89, %v504
  %699 = vst.msk [vmem:[%s3 + $0x100] sm:$0xff] %vm89, %v509
  %700 = vst.msk [vmem:[%s3 + $0x108] sm:$0xff] %vm89, %v514
  %701 = vst.msk [vmem:[%s3 + $0x110] sm:$0xff] %vm89, %v519
  %702 = vst.msk [vmem:[%s3 + $0x118] sm:$0xff] %vm89, %v524
  %703 = vst.msk [vmem:[%s3 + $0x120] sm:$0xff] %vm89, %v529
  %704 = vst.msk [vmem:[%s3 + $0x128] sm:$0xff] %vm89, %v534
  %705 = vst.msk [vmem:[%s3 + $0x130] sm:$0xff] %vm89, %v539
  %706 = vst.msk [vmem:[%s3 + $0x138] sm:$0xff] %vm89, %v544
  %707 = vst.msk [vmem:[%s3 + $0x140] sm:$0xff] %vm89, %v549
  %708 = vst.msk [vmem:[%s3 + $0x148] sm:$0xff] %vm89, %v554
  %709 = vst.msk [vmem:[%s3 + $0x150] sm:$0xff] %vm89, %v559
  %710 = vst.msk [vmem:[%s3 + $0x158] sm:$0xff] %vm89, %v564
  %711 = vst.msk [vmem:[%s3 + $0x160] sm:$0xff] %vm89, %v569
  %712 = vst.msk [vmem:[%s3 + $0x168] sm:$0xff] %vm89, %v574
  %713 = vst.msk [vmem:[%s3 + $0x170] sm:$0xff] %vm89, %v579
  %714 = vst.msk [vmem:[%s3 + $0x178] sm:$0xff] %vm89, %v584
  %715 = vst.msk [vmem:[%s3 + $0x180] sm:$0xff] %vm89, %v589
  %716 = vst.msk [vmem:[%s3 + $0x188] sm:$0xff] %vm89, %v594
  %717 = vst.msk [vmem:[%s3 + $0x190] sm:$0xff] %vm89, %v599
  %718 = vst.msk [vmem:[%s3 + $0x198] sm:$0xff] %vm89, %v604
  %719 = vst.msk [vmem:[%s3 + $0x1a0] sm:$0xff] %vm89, %v609
  %720 = vst.msk [vmem:[%s3 + $0x1a8] sm:$0xff] %vm89, %v614
  %721 = vst.msk [vmem:[%s3 + $0x1b0] sm:$0xff] %vm89, %v619
  %722 = vst.msk [vmem:[%s3 + $0x1b8] sm:$0xff] %vm89, %v624
  %723 = vst.msk [vmem:[%s3 + $0x1c0] sm:$0xff] %vm89, %v629
  %724 = vst.msk [vmem:[%s3 + $0x1c8] sm:$0xff] %vm89, %v634
  %725 = vst.msk [vmem:[%s3 + $0x1d0] sm:$0xff] %vm89, %v639
  %726 = vst.msk [vmem:[%s3 + $0x1d8] sm:$0xff] %vm89, %v644
  %727 = vst.msk [vmem:[%s3 + $0x1e0] sm:$0xff] %vm89, %v649
  %728 = vst.msk [vmem:[%s3 + $0x1e8] sm:$0xff] %vm89, %v654
  %729 = vst.msk [vmem:[%s3 + $0x1f0] sm:$0xff] %vm89, %v659
  %730 = vst.msk [vmem:[%s3 + $0x1f8] sm:$0xff] %vm89, %v664
  // Predicated region
  $region14: #{tpu_custom_call.1} parent=0 // pred_check
    _
  $region15: #{tpu_custom_call.1} parent=0 // pred_check_branch
    %732 = sbr.rel (0) target = $region17
  $region16: #{tpu_custom_call.1} parent=0 // pred_region
    _
  $region17: #{tpu_custom_call.1} parent=0 // pred_fallthru
    _
  // Predicated region
  $region18: #{tpu_custom_call.1} parent=0 // pred_check
    _
  $region19: #{tpu_custom_call.1} parent=0 // pred_check_branch
    %734 = sbr.rel (0) target = $region21
  $region20: #{tpu_custom_call.1} parent=0 // pred_region
    _
  $region21: #{tpu_custom_call.1} parent=0 // pred_fallthru
    _

</llo_original>
